<compile_context>
chip_gen: v7x
topology: tpu7x:2x2x1
jax: 0.10.0
libtpu: 0.0.40
codegen_flags: <defaults>
</compile_context>

<pallas_src>
import functools

import jax
import jax.numpy as jnp
from jax import lax
from jax.experimental import pallas as pl
from jax.experimental.pallas import tpu as pltpu


def _sigmoid_hist_kernel(x_ref, o_ref, acc_ref, *, edge_consts, scale,
                         out_scale, nr_total, n_blk, steps_per, num_bins,
                         mask_rows):
    """Grid = (P, B, col_tiles, n_chunks); reduction axis (n) innermost.

    x_ref   : (n_blk, c_blk)   rows of the lane-folded view (r examples / row)
    o_ref   : (K, c_blk)       per-lane soft histogram (stored at last n step)
    acc_ref : (K+1, c_blk)     f32 scratch: per-edge tanh sums over the rows
    """
    n_idx = pl.program_id(3)

    @pl.when(n_idx == 0)
    def _init():
        acc_ref[...] = jnp.zeros_like(acc_ref)

    x = x_ref[...]                                      # (n_blk, c_blk) f32

    if mask_rows:
        # Phantom rows (ragged tail and/or fully out-of-range blocks of the
        # parallel N-split): the sentinel saturates tanh to exactly +1 at every
        # edge, so adjacent-edge differences cancel -> zero contribution.
        base = (pl.program_id(0) * steps_per + n_idx) * n_blk
        row = lax.broadcasted_iota(jnp.int32, x.shape, 0) + base
        x = jnp.where(row < nr_total, x, jnp.float32(1e30))

    xs = x * scale                                      # hoisted 0.5*sigma scale

    # One native EUP tanh per edge (K+1 edges, telescoped to K bins later).
    rows = []
    for c in edge_consts:                               # static, unrolled
        t = jnp.tanh(xs - c)                            # (n_blk, c_blk)
        rows.append(jnp.sum(t, axis=0, keepdims=True))  # sublane reduction
    # Single unmasked (K+1, c_blk) read-add-store instead of K+1 1-row RMWs.
    acc_ref[...] += jnp.concatenate(rows, axis=0)

    @pl.when(n_idx == steps_per - 1)
    def _finalize():
        t_all = acc_ref[...]                            # (K+1, c_blk)
        hist = (t_all[:num_bins, :] - t_all[1:, :]) * out_scale
        o_ref[...] = hist.astype(o_ref.dtype)


def sigmoid_histogram_batched(x, *, num_bins, vmin, vmax, sigma,
                              c_tile=512, n_tile=2048):
    """Pallas TPU implementation of SigmoidHistogramBatched.forward."""
    if x.ndim == 2:                                     # mimic torch unsqueeze(0)
        x = x[None, ...]
    if x.ndim != 3:
        raise ValueError("expected a 2-D or 3-D input")
    B, N, F = map(int, x.shape)
    K = int(num_bins)
    delta = float(vmax - vmin) / float(K)
    scale = 0.5 * float(sigma)                          # tanh argument scale
    # Bin edges e_j = vmin + delta*j; bin k uses edges e_k and e_{k+1}.
    edge_consts = tuple(scale * (float(vmin) + delta * j) for j in range(K + 1))
    out_scale = 0.5 / float(N)                          # folds tanh's 0.5 and 1/N

    x = x.astype(jnp.float32)

    # ---- Lane folding: pack r consecutive examples onto the lane axis --------
    # (layout-preserving reshape, no HBM copy).  r divides N exactly so no
    # in-row raggedness is ever created.
    cap = max(1, 128 // F)
    r = 1
    for d in range(min(cap, N), 0, -1):
        if N % d == 0:
            r = d
            break
    NR, W = N // r, r * F
    x3 = x.reshape(B, NR, W)

    # ---- Column (lane) tiling -------------------------------------------------
    c_tile = max(128, (int(c_tile) // 128) * 128)
    if W <= c_tile:
        c_blk, w_pad = W, W                             # full extent (no pad)
    else:
        c_blk = c_tile                                  # multiple of 128
        w_pad = pl.cdiv(W, c_blk) * c_blk
        if w_pad != W:                                  # rare large-F path
            x3 = jnp.pad(x3, ((0, 0), (0, 0), (0, w_pad - W)))
    col_tiles = w_pad // c_blk

    # ---- Row (reduction) tiling: bounds VMEM on every generation --------------
    n_blk = NR if NR <= int(n_tile) else int(n_tile)
    nblocks = pl.cdiv(NR, n_blk)

    # ---- v7x megacore: keep both TensorCores busy when B*col_tiles == 1 -------
    P = 2 if (B * col_tiles == 1 and nblocks >= 2) else 1
    steps_per = pl.cdiv(nblocks, P)
    mask_rows = (P * steps_per * n_blk) != NR
    last_blk = nblocks - 1

    def x_map(p, b, c, n):
        # Clamp so logical blocks past the real row extent re-read the last
        # valid block; their rows are then zeroed out by the sentinel mask.
        return (b, jnp.minimum(p * steps_per + n, last_blk), c)

    kernel = functools.partial(
        _sigmoid_hist_kernel,
        edge_consts=edge_consts, scale=scale, out_scale=out_scale,
        nr_total=NR, n_blk=n_blk, steps_per=steps_per, num_bins=K,
        mask_rows=mask_rows)

    out = pl.pallas_call(
        kernel,
        out_shape=jax.ShapeDtypeStruct((P, B, K, w_pad), jnp.float32),
        grid_spec=pltpu.PrefetchScalarGridSpec(
            num_scalar_prefetch=0,
            grid=(P, B, col_tiles, steps_per),
            in_specs=[pl.BlockSpec((None, n_blk, c_blk), x_map)],
            out_specs=pl.BlockSpec((None, None, K, c_blk),
                                   lambda p, b, c, n: (p, b, 0, c)),
            scratch_shapes=[pltpu.VMEM((K + 1, c_blk), jnp.float32)],
        ),
        compiler_params=pltpu.CompilerParams(
            dimension_semantics=("parallel", "parallel", "parallel",
                                 "arbitrary")),
    )(x3)                                               # (P, B, K, w_pad)

    # ---- Tiny layout plumbing on ~B*K*W floats --------------------------------
    hist = out.sum(axis=0) if P > 1 else out[0]         # (B, K, w_pad)
    hist = hist[:, :, :W]                               # drop padded lanes
    if r > 1:
        hist = hist.reshape(B, K, r, F).sum(axis=2)     # fold lane groups back
    else:
        hist = hist.reshape(B, K, F)
    # torch layout: result[b, f*K + k]
    return jnp.transpose(hist, (0, 2, 1)).reshape(B, F * K)


def _reference(x, *, num_bins, vmin, vmax, sigma):
    """Pure-JAX port of the PyTorch forward (no telescoping), for verification."""
    if x.ndim == 2:
        x = x[None, ...]
    delta = float(vmax - vmin) / float(num_bins)
    centers = float(vmin) + delta * (jnp.arange(num_bins, dtype=jnp.float32) + 0.5)
    n = x.shape[1]
    t = jnp.swapaxes(x, 1, 2)[:, :, None, :] - centers[None, None, :, None]
    t = jax.nn.sigmoid(sigma * (t + delta / 2.0)) - jax.nn.sigmoid(
        sigma * (t - delta / 2.0))
    t = jnp.sum(jnp.swapaxes(t, 2, 3), axis=2) / n      # (B, F, num_bins)
    return t.reshape(t.shape[0], -1)


if __name__ == "__main__":
    key = jax.random.PRNGKey(0)
    k1, k2, k3, k4, k5 = jax.random.split(key, 5)

    # --- Test 1: small batched (B, N, F) = (2, 16, 8), 16 bins. ---------------
    # Exercises the N->lane folding (r=16, 128 dense lanes).
    NUM_BINS, VMIN, VMAX, SIGMA = 16, 0.0, 1.0, 100.0
    B, N, F = 2, 16, 8
    x = jax.random.uniform(k1, (B, N, F), dtype=jnp.float32)
    out = jax.block_until_ready(
        sigmoid_histogram_batched(x, num_bins=NUM_BINS, vmin=VMIN, vmax=VMAX,
                                  sigma=SIGMA))
    ref = _reference(x, num_bins=NUM_BINS, vmin=VMIN, vmax=VMAX, sigma=SIGMA)
    assert out.shape == (B, F * NUM_BINS)
    assert jnp.allclose(out, ref, atol=2e-4, rtol=2e-4)

    # --- Test 2: 2-D input (torch unsqueeze path). -----------------------------
    x2d = jax.random.uniform(k2, (16, 8), dtype=jnp.float32)
    out2 = jax.block_until_ready(
        sigmoid_histogram_batched(x2d, num_bins=NUM_BINS, vmin=VMIN, vmax=VMAX,
                                  sigma=SIGMA))
    ref2 = _reference(x2d, num_bins=NUM_BINS, vmin=VMIN, vmax=VMAX, sigma=SIGMA)
    assert out2.shape == (1, 8 * NUM_BINS)
    assert jnp.allclose(out2, ref2, atol=2e-4, rtol=2e-4)

    # --- Test 3: multi-bag, no folding (F=72), chunked N with ragged tail. -----
    B3, N3, F3, K3 = 4, 1300, 72, 10
    x3 = jax.random.uniform(k3, (B3, N3, F3), dtype=jnp.float32,
                            minval=-1.0, maxval=1.0)
    out3 = jax.block_until_ready(
        sigmoid_histogram_batched(x3, num_bins=K3, vmin=-1.0, vmax=1.0,
                                  sigma=25.0, n_tile=512))
    ref3 = _reference(x3, num_bins=K3, vmin=-1.0, vmax=1.0, sigma=25.0)
    assert out3.shape == (B3, F3 * K3)
    assert jnp.allclose(out3, ref3, atol=2e-4, rtol=2e-4)

    # --- Test 4: single bag, small F -> folding + parallel N-split (P=2) with --
    # a clamped, fully-masked trailing block (exercises the v7x megacore path).
    B4, N4, F4, K4 = 1, 3072, 8, 12
    x4 = jax.random.uniform(k4, (B4, N4, F4), dtype=jnp.float32,
                            minval=-1.0, maxval=1.0)
    out4 = jax.block_until_ready(
        sigmoid_histogram_batched(x4, num_bins=K4, vmin=-1.0, vmax=1.0,
                                  sigma=50.0, n_tile=64))
    ref4 = _reference(x4, num_bins=K4, vmin=-1.0, vmax=1.0, sigma=50.0)
    assert out4.shape == (B4, F4 * K4)
    assert jnp.allclose(out4, ref4, atol=2e-4, rtol=2e-4)

    # --- Test 5: large F -> multiple column tiles + lane padding. --------------
    B5, N5, F5, K5 = 2, 64, 200, 8
    x5 = jax.random.uniform(k5, (B5, N5, F5), dtype=jnp.float32)
    out5 = jax.block_until_ready(
        sigmoid_histogram_batched(x5, num_bins=K5, vmin=0.0, vmax=1.0,
                                  sigma=80.0, c_tile=128))
    ref5 = _reference(x5, num_bins=K5, vmin=0.0, vmax=1.0, sigma=80.0)
    assert out5.shape == (B5, F5 * K5)
    assert jnp.allclose(out5, ref5, atol=2e-4, rtol=2e-4)

    print("KERNEL_OK")
</pallas_src>

<mosaic_0001>
module attributes {stable_mosaic.version = 11 : i64} {
  func.func @_sigmoid_hist_kernel(%arg0: i32, %arg1: i32, %arg2: i32, %arg3: i32, %arg4: memref<1x1x128xf32, #tpu.memory_space<vmem>>, %arg5: memref<1x1x16x128xf32, #tpu.memory_space<vmem>>, %arg6: memref<17x128xf32, #tpu.memory_space<vmem>>) attributes {dimension_semantics = [#tpu.dimension_semantics<parallel>, #tpu.dimension_semantics<parallel>, #tpu.dimension_semantics<parallel>, #tpu.dimension_semantics<arbitrary>], iteration_bounds = array<i64: 1, 2, 1, 1>, scalar_prefetch = 0 : i64, scratch_operands = 1 : i64, tpu.core_type = #tpu.core_type<tc>, window_params = [{transform_indices = @transform_0, window_bounds = array<i64: 1, 1, 128>}, {transform_indices = @transform_1, window_bounds = array<i64: 1, 1, 16, 128>}]} {
    %c0_i32 = arith.constant 0 : i32
    %0 = arith.cmpi eq, %arg3, %c0_i32 : i32
    %1 = arith.extui %0 : i1 to i32
    %c0_i32_0 = arith.constant 0 : i32
    %2 = arith.cmpi ne, %1, %c0_i32_0 : i32
    scf.if %2 {
      %cst_43 = arith.constant 0.000000e+00 : f32
      %100 = vector.broadcast %cst_43 : f32 to vector<17x128xf32>
      %c0_44 = arith.constant 0 : index
      %c0_45 = arith.constant 0 : index
      %101 = vector.load %arg6[%c0_44, %c0_45] : memref<17x128xf32, #tpu.memory_space<vmem>>, vector<17x128xf32>
      tpu.vector_store %arg6[%c0_44, %c0_45], %100 {strides = array<i32>} : memref<17x128xf32, #tpu.memory_space<vmem>>, vector<17x128xf32>,
    } else {
    }
    %c0 = arith.constant 0 : index
    %c0_1 = arith.constant 0 : index
    %c0_2 = arith.constant 0 : index
    %3 = vector.load %arg4[%c0, %c0_1, %c0_2] : memref<1x1x128xf32, #tpu.memory_space<vmem>>, vector<1x1x128xf32>
    %4 = vector.shape_cast %3 : vector<1x1x128xf32> to vector<1x128xf32>
    %cst = arith.constant 5.000000e+01 : f32
    %5 = vector.broadcast %cst : f32 to vector<1x128xf32>
    %6 = arith.mulf %4, %5 : vector<1x128xf32>
    %cst_3 = arith.constant 0.000000e+00 : f32
    %7 = vector.broadcast %cst_3 : f32 to vector<1x128xf32>
    %8 = arith.subf %6, %7 : vector<1x128xf32>
    %9 = math.tanh %8 : vector<1x128xf32>
    %cst_4 = arith.constant dense<0.000000e+00> : vector<128xf32>
    %10 = vector.multi_reduction <add>, %9, %cst_4 [0] : vector<1x128xf32> to vector<128xf32>
    %11 = vector.shape_cast %10 : vector<128xf32> to vector<1x128xf32>
    %cst_5 = arith.constant 3.125000e+00 : f32
    %12 = vector.broadcast %cst_5 : f32 to vector<1x128xf32>
    %13 = arith.subf %6, %12 : vector<1x128xf32>
    %14 = math.tanh %13 : vector<1x128xf32>
    %cst_6 = arith.constant dense<0.000000e+00> : vector<128xf32>
    %15 = vector.multi_reduction <add>, %14, %cst_6 [0] : vector<1x128xf32> to vector<128xf32>
    %16 = vector.shape_cast %15 : vector<128xf32> to vector<1x128xf32>
    %cst_7 = arith.constant 6.250000e+00 : f32
    %17 = vector.broadcast %cst_7 : f32 to vector<1x128xf32>
    %18 = arith.subf %6, %17 : vector<1x128xf32>
    %19 = math.tanh %18 : vector<1x128xf32>
    %cst_8 = arith.constant dense<0.000000e+00> : vector<128xf32>
    %20 = vector.multi_reduction <add>, %19, %cst_8 [0] : vector<1x128xf32> to vector<128xf32>
    %21 = vector.shape_cast %20 : vector<128xf32> to vector<1x128xf32>
    %cst_9 = arith.constant 9.375000e+00 : f32
    %22 = vector.broadcast %cst_9 : f32 to vector<1x128xf32>
    %23 = arith.subf %6, %22 : vector<1x128xf32>
    %24 = math.tanh %23 : vector<1x128xf32>
    %cst_10 = arith.constant dense<0.000000e+00> : vector<128xf32>
    %25 = vector.multi_reduction <add>, %24, %cst_10 [0] : vector<1x128xf32> to vector<128xf32>
    %26 = vector.shape_cast %25 : vector<128xf32> to vector<1x128xf32>
    %cst_11 = arith.constant 1.250000e+01 : f32
    %27 = vector.broadcast %cst_11 : f32 to vector<1x128xf32>
    %28 = arith.subf %6, %27 : vector<1x128xf32>
    %29 = math.tanh %28 : vector<1x128xf32>
    %cst_12 = arith.constant dense<0.000000e+00> : vector<128xf32>
    %30 = vector.multi_reduction <add>, %29, %cst_12 [0] : vector<1x128xf32> to vector<128xf32>
    %31 = vector.shape_cast %30 : vector<128xf32> to vector<1x128xf32>
    %cst_13 = arith.constant 1.562500e+01 : f32
    %32 = vector.broadcast %cst_13 : f32 to vector<1x128xf32>
    %33 = arith.subf %6, %32 : vector<1x128xf32>
    %34 = math.tanh %33 : vector<1x128xf32>
    %cst_14 = arith.constant dense<0.000000e+00> : vector<128xf32>
    %35 = vector.multi_reduction <add>, %34, %cst_14 [0] : vector<1x128xf32> to vector<128xf32>
    %36 = vector.shape_cast %35 : vector<128xf32> to vector<1x128xf32>
    %cst_15 = arith.constant 1.875000e+01 : f32
    %37 = vector.broadcast %cst_15 : f32 to vector<1x128xf32>
    %38 = arith.subf %6, %37 : vector<1x128xf32>
    %39 = math.tanh %38 : vector<1x128xf32>
    %cst_16 = arith.constant dense<0.000000e+00> : vector<128xf32>
    %40 = vector.multi_reduction <add>, %39, %cst_16 [0] : vector<1x128xf32> to vector<128xf32>
    %41 = vector.shape_cast %40 : vector<128xf32> to vector<1x128xf32>
    %cst_17 = arith.constant 2.187500e+01 : f32
    %42 = vector.broadcast %cst_17 : f32 to vector<1x128xf32>
    %43 = arith.subf %6, %42 : vector<1x128xf32>
    %44 = math.tanh %43 : vector<1x128xf32>
    %cst_18 = arith.constant dense<0.000000e+00> : vector<128xf32>
    %45 = vector.multi_reduction <add>, %44, %cst_18 [0] : vector<1x128xf32> to vector<128xf32>
    %46 = vector.shape_cast %45 : vector<128xf32> to vector<1x128xf32>
    %cst_19 = arith.constant 2.500000e+01 : f32
    %47 = vector.broadcast %cst_19 : f32 to vector<1x128xf32>
    %48 = arith.subf %6, %47 : vector<1x128xf32>
    %49 = math.tanh %48 : vector<1x128xf32>
    %cst_20 = arith.constant dense<0.000000e+00> : vector<128xf32>
    %50 = vector.multi_reduction <add>, %49, %cst_20 [0] : vector<1x128xf32> to vector<128xf32>
    %51 = vector.shape_cast %50 : vector<128xf32> to vector<1x128xf32>
    %cst_21 = arith.constant 2.812500e+01 : f32
    %52 = vector.broadcast %cst_21 : f32 to vector<1x128xf32>
    %53 = arith.subf %6, %52 : vector<1x128xf32>
    %54 = math.tanh %53 : vector<1x128xf32>
    %cst_22 = arith.constant dense<0.000000e+00> : vector<128xf32>
    %55 = vector.multi_reduction <add>, %54, %cst_22 [0] : vector<1x128xf32> to vector<128xf32>
    %56 = vector.shape_cast %55 : vector<128xf32> to vector<1x128xf32>
    %cst_23 = arith.constant 3.125000e+01 : f32
    %57 = vector.broadcast %cst_23 : f32 to vector<1x128xf32>
    %58 = arith.subf %6, %57 : vector<1x128xf32>
    %59 = math.tanh %58 : vector<1x128xf32>
    %cst_24 = arith.constant dense<0.000000e+00> : vector<128xf32>
    %60 = vector.multi_reduction <add>, %59, %cst_24 [0] : vector<1x128xf32> to vector<128xf32>
    %61 = vector.shape_cast %60 : vector<128xf32> to vector<1x128xf32>
    %cst_25 = arith.constant 3.437500e+01 : f32
    %62 = vector.broadcast %cst_25 : f32 to vector<1x128xf32>
    %63 = arith.subf %6, %62 : vector<1x128xf32>
    %64 = math.tanh %63 : vector<1x128xf32>
    %cst_26 = arith.constant dense<0.000000e+00> : vector<128xf32>
    %65 = vector.multi_reduction <add>, %64, %cst_26 [0] : vector<1x128xf32> to vector<128xf32>
    %66 = vector.shape_cast %65 : vector<128xf32> to vector<1x128xf32>
    %cst_27 = arith.constant 3.750000e+01 : f32
    %67 = vector.broadcast %cst_27 : f32 to vector<1x128xf32>
    %68 = arith.subf %6, %67 : vector<1x128xf32>
    %69 = math.tanh %68 : vector<1x128xf32>
    %cst_28 = arith.constant dense<0.000000e+00> : vector<128xf32>
    %70 = vector.multi_reduction <add>, %69, %cst_28 [0] : vector<1x128xf32> to vector<128xf32>
    %71 = vector.shape_cast %70 : vector<128xf32> to vector<1x128xf32>
    %cst_29 = arith.constant 4.062500e+01 : f32
    %72 = vector.broadcast %cst_29 : f32 to vector<1x128xf32>
    %73 = arith.subf %6, %72 : vector<1x128xf32>
    %74 = math.tanh %73 : vector<1x128xf32>
    %cst_30 = arith.constant dense<0.000000e+00> : vector<128xf32>
    %75 = vector.multi_reduction <add>, %74, %cst_30 [0] : vector<1x128xf32> to vector<128xf32>
    %76 = vector.shape_cast %75 : vector<128xf32> to vector<1x128xf32>
    %cst_31 = arith.constant 4.375000e+01 : f32
    %77 = vector.broadcast %cst_31 : f32 to vector<1x128xf32>
    %78 = arith.subf %6, %77 : vector<1x128xf32>
    %79 = math.tanh %78 : vector<1x128xf32>
    %cst_32 = arith.constant dense<0.000000e+00> : vector<128xf32>
    %80 = vector.multi_reduction <add>, %79, %cst_32 [0] : vector<1x128xf32> to vector<128xf32>
    %81 = vector.shape_cast %80 : vector<128xf32> to vector<1x128xf32>
    %cst_33 = arith.constant 4.687500e+01 : f32
    %82 = vector.broadcast %cst_33 : f32 to vector<1x128xf32>
    %83 = arith.subf %6, %82 : vector<1x128xf32>
    %84 = math.tanh %83 : vector<1x128xf32>
    %cst_34 = arith.constant dense<0.000000e+00> : vector<128xf32>
    %85 = vector.multi_reduction <add>, %84, %cst_34 [0] : vector<1x128xf32> to vector<128xf32>
    %86 = vector.shape_cast %85 : vector<128xf32> to vector<1x128xf32>
    %cst_35 = arith.constant 5.000000e+01 : f32
    %87 = vector.broadcast %cst_35 : f32 to vector<1x128xf32>
    %88 = arith.subf %6, %87 : vector<1x128xf32>
    %89 = math.tanh %88 : vector<1x128xf32>
    %cst_36 = arith.constant dense<0.000000e+00> : vector<128xf32>
    %90 = vector.multi_reduction <add>, %89, %cst_36 [0] : vector<1x128xf32> to vector<128xf32>
    %91 = vector.shape_cast %90 : vector<128xf32> to vector<1x128xf32>
    %c0_37 = arith.constant 0 : index
    %c0_38 = arith.constant 0 : index
    %92 = vector.load %arg6[%c0_37, %c0_38] : memref<17x128xf32, #tpu.memory_space<vmem>>, vector<17x128xf32>
    %93 = tpu.concatenate %11, %16, %21, %26, %31, %36, %41, %46, %51, %56, %61, %66, %71, %76, %81, %86 in 0 : vector<1x128xf32>, vector<1x128xf32>, vector<1x128xf32>, vector<1x128xf32>, vector<1x128xf32>, vector<1x128xf32>, vector<1x128xf32>, vector<1x128xf32>, vector<1x128xf32>, vector<1x128xf32>, vector<1x128xf32>, vector<1x128xf32>, vector<1x128xf32>, vector<1x128xf32>, vector<1x128xf32>, vector<1x128xf32> -> vector<16x128xf32>
    %94 = tpu.concatenate %93, %91 in 0 : vector<16x128xf32>, vector<1x128xf32> -> vector<17x128xf32>
    %95 = arith.addf %92, %94 : vector<17x128xf32>
    %c0_39 = arith.constant 0 : index
    %c0_40 = arith.constant 0 : index
    %96 = vector.load %arg6[%c0_39, %c0_40] : memref<17x128xf32, #tpu.memory_space<vmem>>, vector<17x128xf32>
    tpu.vector_store %arg6[%c0_39, %c0_40], %95 {strides = array<i32>} : memref<17x128xf32, #tpu.memory_space<vmem>>, vector<17x128xf32>,
    %c0_i32_41 = arith.constant 0 : i32
    %97 = arith.cmpi eq, %arg3, %c0_i32_41 : i32
    %98 = arith.extui %97 : i1 to i32
    %c0_i32_42 = arith.constant 0 : i32
    %99 = arith.cmpi ne, %98, %c0_i32_42 : i32
    scf.if %99 {
      %c0_43 = arith.constant 0 : index
      %c0_44 = arith.constant 0 : index
      %100 = vector.load %arg6[%c0_43, %c0_44] : memref<17x128xf32, #tpu.memory_space<vmem>>, vector<17x128xf32>
      %101 = vector.extract_strided_slice %100 {offsets = [0, 0], sizes = [16, 128], strides = [1, 1]} : vector<17x128xf32> to vector<16x128xf32>
      %102 = vector.extract_strided_slice %100 {offsets = [1, 0], sizes = [16, 128], strides = [1, 1]} : vector<17x128xf32> to vector<16x128xf32>
      %103 = arith.subf %101, %102 : vector<16x128xf32>
      %cst_45 = arith.constant 3.125000e-02 : f32
      %104 = vector.broadcast %cst_45 : f32 to vector<16x128xf32>
      %105 = arith.mulf %103, %104 : vector<16x128xf32>
      %c0_46 = arith.constant 0 : index
      %c0_47 = arith.constant 0 : index
      %c0_48 = arith.constant 0 : index
      %c0_49 = arith.constant 0 : index
      %106 = vector.load %arg5[%c0_46, %c0_47, %c0_48, %c0_49] : memref<1x1x16x128xf32, #tpu.memory_space<vmem>>, vector<1x1x16x128xf32>
      %107 = vector.shape_cast %106 : vector<1x1x16x128xf32> to vector<16x128xf32>
      %108 = vector.shape_cast %105 : vector<16x128xf32> to vector<1x1x16x128xf32>
      tpu.vector_store %arg5[%c0_46, %c0_47, %c0_48, %c0_49], %108 {strides = array<i32>} : memref<1x1x16x128xf32, #tpu.memory_space<vmem>>, vector<1x1x16x128xf32>,
    } else {
    }
    return
  }
  func.func @transform_0(%arg0: i32, %arg1: i32, %arg2: i32, %arg3: i32) -> (i32, i32, i32) {
    %c1_i32 = arith.constant 1 : i32
    %0 = arith.muli %arg0, %c1_i32 : i32
    %1 = arith.addi %0, %arg3 : i32
    %c0_i32 = arith.constant 0 : i32
    %2 = arith.minsi %1, %c0_i32 : i32
    %c0_i32_0 = arith.constant 0 : i32
    return %arg1, %2, %arg2 : i32, i32, i32
  }
  func.func @transform_1(%arg0: i32, %arg1: i32, %arg2: i32, %arg3: i32) -> (i32, i32, i32, i32) {
    %c0_i32 = arith.constant 0 : i32
    %c0_i32_0 = arith.constant 0 : i32
    return %arg0, %arg1, %c0_i32, %arg2 : i32, i32, i32, i32
  }
}

</mosaic_0001>

<llo_original>
// kernel: tpu_custom_call.1
$region0: #{tpu_custom_call.1}
  #allocation0 [shape = 'u32[]', space=smem, size = 0x4, offset = 0x4, fixed_abs, tag = 'smem constant byte address 0x4 - core index']
  #allocation1 [shape = 'u32[144,128]{1,0:T(1,128)}', space=vmem, size = 0x12000, scoped, tag = 'internal scratch']
  #allocation2 [shape = 'f32[17,128]{1,0:T(8,128)}', space=vmem, size = 0x3000, scoped, tag = 'scratch operand']
  %s0 = inlined_call_operand.hbm [shape: f32[2,1,128], index: 0, kind: input, shape index: {}]
  %s1 = inlined_call_operand.hbm [shape: f32[1,2,16,128], index: 1, kind: output, shape index: {}]
  %s2 = sld [smem:[#allocation0]]
  $region49: #{tpu_custom_call.1} parent=0
    _
  %s4 = ssub.s32 1, %s2
  %s5 = scalar_select 0, %s4, %s2
  $region1: #{tpu_custom_call.1} parent=0
    #allocation3 [shape = 'u8[1024]{0}', space=vmem, size = 0x400, scoped, tag = 'input window, operand 0']
    #allocation4 [shape = 's32[2]{0}', space=sflag, size = 0x8, scoped, tag = 'scoped memory for tpu_custom_call.1']
    #allocation5 [shape = 's32[2]{0}', space=sflag, size = 0x8, scoped, tag = 'scoped memory for tpu_custom_call.1']
    #allocation6 [shape = 'u8[16384]{0}', space=vmem, size = 0x4000, scoped, tag = 'output window, operand 0']
    %6 = vsyncpa [#allocation4], 0
    %s7 = scalar_lea.sflag [#allocation4], 1
    %8 = vsyncpa %s7, 0
    %9 = vsyncpa [#allocation5], 0
    %s10 = scalar_lea.sflag [#allocation5], 1
    %11 = vsyncpa %s10, 0
    loop: start=0, step=1, limit=4
    $region2: #{tpu_custom_call.1} parent=1 // loop_pre_header
      _
    $region3: #{tpu_custom_call.1} parent=1 // loop_header
      %s13 = sphi 0, %s17
      %p14 = scmp.ge.s32.totalorder %s13, 4
      %s20 = sphi 0, %s46
      %s21 = sphi 0, %s42
      %s22 = sphi 0, %s38
      %s23 = sphi 0, %s34
      %s24 = sphi 0, %s20
      %s25 = sphi 0, %s21
      %s26 = sphi 0, %s22
      %s27 = sphi 0, %s23
      %s28 = sphi 0, %s24
      %s29 = sphi 0, %s25
      %s30 = sphi 0, %s26
      %s31 = sphi 0, %s27
      %s59 = sphi 0, %s61
      %s62 = sphi 0, %s59
      %s63 = sphi 0, %s62
      %s79 = sphi 0, %s63
      %s89 = sphi 0, %s91
      %s92 = sphi 0, %s89
      %s93 = sphi 0, %s92
      %s109 = sphi 0, %s93
    $region4: #{tpu_custom_call.1} parent=1 // loop_header_branch
      %16 = sbr.rel (%p14) target = $region8
    $region5: #{tpu_custom_call.1} parent=1 // loop_body
      %s18 = ssub.s32 %s13, 1
      %s19 = ssub.s32 %s13, 2
      %s32 = sadd.s32 1, %s23
      %p33 = scmp.ge.s32.totalorder %s32, 1
      %s34 = scalar_select %p33, 0, %s32
      %s35 = sadd.s32 1, %s22
      %s36 = scalar_select %p33, %s35, %s22
      %p37 = scmp.ge.s32.totalorder %s36, 1
      %s38 = scalar_select %p37, 0, %s36
      %s39 = sadd.s32 1, %s21
      %s40 = scalar_select %p37, %s39, %s21
      %p41 = scmp.ge.s32.totalorder %s40, 2
      %s42 = scalar_select %p41, 0, %s40
      %s43 = sadd.s32 1, %s20
      %s44 = scalar_select %p41, %s43, %s20
      %p45 = scmp.ge.s32.totalorder %s44, 1
      %s46 = scalar_select %p45, 0, %s44
      %s47 = sadd.s32 %s20, %s23
      %p48 = scmp.lt.s32.totalorder %s47, 0
      %s49 = scalar_select %p48, %s47, 0
      %s50 = sadd.s32 %s46, %s34
      %p51 = scmp.lt.s32.totalorder %s50, 0
      %s52 = scalar_select %p51, %s50, 0
      %s53 = ssub.s32 %s21, %s42
      %s54 = ssub.s32 %s49, %s52
      %s55 = sor.u32 %s53, %s54
      %s56 = ssub.s32 %s22, %s38
      %s57 = sor.u32 %s55, %s56
      %p58 = scmp.eq.s32.totalorder %s57, 0
      %s60 = sadd.s32 %s59, 1
      %s61 = scalar_select %p58, %s59, %s60
      %p64 = pneg %p58
      %p65 = scmp.eq.s32.totalorder %s13, 1
      %p66 = por %p64, %p65
      %p67 = scmp.ne.s32.totalorder %s59, %s62
      %p68 = scmp.eq.s32.totalorder %s13, 0
      %p69 = por %p67, %p68
      %p70 = scmp.ne.s32.totalorder %s59, %s62
      %p71 = scmp.eq.s32.totalorder %s18, 1
      %p72 = por %p70, %p71
      %p73 = scmp.ne.s32.totalorder %s62, %s63
      %p74 = scmp.eq.s32.totalorder %s18, 0
      %p75 = por %p73, %p74
      %p76 = scmp.ne.s32.totalorder %s62, %s63
      %p77 = scmp.eq.s32.totalorder %s19, 1
      %p78 = por %p76, %p77
      %p80 = scmp.ne.s32.totalorder %s63, %s79
      %p81 = scmp.eq.s32.totalorder %s19, 0
      %p82 = por %p80, %p81
      %s83 = ssub.s32 %s20, %s46
      %s84 = ssub.s32 %s21, %s42
      %s85 = sor.u32 %s83, %s84
      %s86 = ssub.s32 %s22, %s38
      %s87 = sor.u32 %s85, %s86
      %p88 = scmp.eq.s32.totalorder %s87, 0
      %s90 = sadd.s32 %s89, 1
      %s91 = scalar_select %p88, %s89, %s90
      %p94 = pneg %p88
      %p95 = scmp.eq.s32.totalorder %s13, 1
      %p96 = por %p94, %p95
      %p97 = scmp.ne.s32.totalorder %s89, %s92
      %p98 = scmp.eq.s32.totalorder %s13, 0
      %p99 = por %p97, %p98
      %p100 = scmp.ne.s32.totalorder %s89, %s92
      %p101 = scmp.eq.s32.totalorder %s18, 1
      %p102 = por %p100, %p101
      %p103 = scmp.ne.s32.totalorder %s92, %s93
      %p104 = scmp.eq.s32.totalorder %s18, 0
      %p105 = por %p103, %p104
      %p106 = scmp.ne.s32.totalorder %s92, %s93
      %p107 = scmp.eq.s32.totalorder %s19, 1
      %p108 = por %p106, %p107
      %p110 = scmp.ne.s32.totalorder %s93, %s109
      %p111 = scmp.eq.s32.totalorder %s19, 0
      %p112 = por %p110, %p111
      %p113 = scmp.le.s32.totalorder 1, %s13
      %p114 = scmp.lt.s32.totalorder %s13, 3
      %p115 = pnand %p113, %p114
      %p116 = pneg %p115
      // Predicated region
      $region9: #{tpu_custom_call.1} parent=5 // pred_check
        _
      $region10: #{tpu_custom_call.1} parent=5 // pred_check_branch
        %118 = sbr.rel (%p115) target = $region12
      $region11: #{tpu_custom_call.1} parent=5 // pred_region
        %s119 = ssub.s32 %s13, 1
      $region12: #{tpu_custom_call.1} parent=5 // pred_fallthru
        _
      %p120 = scmp.lt.s32.totalorder %s13, 2
      // Predicated region
      $region13: #{tpu_custom_call.1} parent=5 // pred_check
        %p121 = pneg %p120
      $region14: #{tpu_custom_call.1} parent=5 // pred_check_branch
        %123 = sbr.rel (%p121) target = $region16
      $region15: #{tpu_custom_call.1} parent=5 // pred_region
        // Predicated region
        $region17: #{tpu_custom_call.1} parent=15 // pred_check
          %p124 = pneg %p69
        $region18: #{tpu_custom_call.1} parent=15 // pred_check_branch
          %126 = sbr.rel (%p124) target = $region20
        $region19: #{tpu_custom_call.1} parent=15 // pred_region
          %s127 = sand.u32 %s59, 1
          %s128 = scalar_lea.sflag [#allocation4], %s127
          %s129 = sand.u32 %s59, 1
          %s130 = scalar_lea.vmem [#allocation3], %s129
          %s131 = sadd.s32 %s20, %s23
          %p132 = scmp.lt.s32.totalorder %s131, 0
          %s133 = scalar_select %p132, %s131, 0
          %s135 = ssub.s32 16, 16
          %136 = vsyncadd %s128, %s135
          %s137 = sadd.s32 %s22, %s133
          %s138 = sadd.s32 %s137, %s21
          %s139 = smul.addr %s138, 16
          %s140 = scalar_lea.hbm %s0, %s139
          %s142 = sshll.u32 %s130, 4
          %s143 = int_to_ptr.vmem [resolvable:$true] %s142
          %145 = dma.hbm_to_vmem [thread:$0]  %s140, 16, %s143, %s128
        $region20: #{tpu_custom_call.1} parent=15 // pred_fallthru
          _
      $region16: #{tpu_custom_call.1} parent=5 // pred_fallthru
        _
      %p146 = scmp.le.s32.totalorder 1, %s13
      %p147 = scmp.lt.s32.totalorder %s13, 3
      %p148 = pnand %p146, %p147
      %p149 = pneg %p148
      // Predicated region
      $region21: #{tpu_custom_call.1} parent=5 // pred_check
        _
      $region22: #{tpu_custom_call.1} parent=5 // pred_check_branch
        %151 = sbr.rel (%p148) target = $region24
      $region23: #{tpu_custom_call.1} parent=5 // pred_region
        %s152 = ssub.s32 %s13, 1
        %s153 = sand.u32 %s62, 1
        %s154 = scalar_lea.sflag [#allocation4], %s153
        %s155 = sand.u32 %s62, 1
        %s156 = scalar_lea.vmem [#allocation3], %s155
        // Predicated region
        $region25: #{tpu_custom_call.1} parent=23 // pred_check
          %p157 = pneg %p75
        $region26: #{tpu_custom_call.1} parent=23 // pred_check_branch
          %159 = sbr.rel (%p157) target = $region28
        $region27: #{tpu_custom_call.1} parent=23 // pred_region
          %160 = dma.done %s154, 16
        $region28: #{tpu_custom_call.1} parent=23 // pred_fallthru
          _
        %s161 = sand.u32 %s62, 1
        %s162 = scalar_lea.sflag [#allocation4], %s161
        %s163 = sand.u32 %s62, 1
        %s164 = scalar_lea.vmem [#allocation3], %s163
        %p165 = pneg %p75
        %p166 = pneg %p72
        %p167 = pneg %p105
        %p168 = pneg %p102
        %s169 = sand.u32 %s92, 1
        %s170 = scalar_lea.sflag [#allocation5], %s169
        %s171 = sand.u32 %s92, 1
        %s172 = smul.addr %s171, 16
        %s173 = scalar_lea.vmem [#allocation6], %s172
        %s174 = sadd.s32 %s24, %s27
        %p175 = scmp.lt.s32.totalorder %s174, 0
        %s176 = scalar_select %p175, %s174, 0
        %p177 = scmp.eq.s32.totalorder %s27, 0
        // Predicated region
        $region29: #{tpu_custom_call.1} parent=23 // pred_check
          %p178 = pneg %p177
        $region30: #{tpu_custom_call.1} parent=23 // pred_check_branch
          %180 = sbr.rel (%p178) target = $region32
        $region31: #{tpu_custom_call.1} parent=23 // pred_region
          %181 = vst [vmem:[#allocation2] sm:$0xff] 0.0
          %182 = vst [vmem:[#allocation2 + $0x8] sm:$0xff] 0.0
          %183 = vst [vmem:[#allocation2 + $0x10] sm:$0x1] 0.0
        $region32: #{tpu_custom_call.1} parent=23 // pred_fallthru
          _
        %v184 = vld [vmem:[%s156] sm:$0x1]
        %v185 = vmul.f32 %v184, 50.0
        %v186 = vtanh.pop %v185
        %v187 = vadd.f32 %v186, 0.0
        %v188 = vsub.f32 %v185, 3.125
        %v189 = vtanh.pop %v188
        %v190 = vadd.f32 %v189, 0.0
        %v191 = vsub.f32 %v185, 6.25
        %v192 = vtanh.pop %v191
        %v193 = vadd.f32 %v192, 0.0
        %v194 = vsub.f32 %v185, 9.375
        %v195 = vtanh.pop %v194
        %v196 = vadd.f32 %v195, 0.0
        %v197 = vsub.f32 %v185, 12.5
        %v198 = vtanh.pop %v197
        %v199 = vadd.f32 %v198, 0.0
        %v200 = vsub.f32 %v185, 15.625
        %v201 = vtanh.pop %v200
        %v202 = vadd.f32 %v201, 0.0
        %v203 = vsub.f32 %v185, 18.75
        %v204 = vtanh.pop %v203
        %v205 = vadd.f32 %v204, 0.0
        %v206 = vsub.f32 %v185, 21.875
        %v207 = vtanh.pop %v206
        %v208 = vadd.f32 %v207, 0.0
        %v209 = vsub.f32 %v185, 25.0
        %v210 = vtanh.pop %v209
        %v211 = vadd.f32 %v210, 0.0
        %v212 = vsub.f32 %v185, 28.125
        %v213 = vtanh.pop %v212
        %v214 = vadd.f32 %v213, 0.0
        %v215 = vsub.f32 %v185, 31.25
        %v216 = vtanh.pop %v215
        %v217 = vadd.f32 %v216, 0.0
        %v218 = vsub.f32 %v185, 34.375
        %v219 = vtanh.pop %v218
        %v220 = vadd.f32 %v219, 0.0
        %v221 = vsub.f32 %v185, 37.5
        %v222 = vtanh.pop %v221
        %v223 = vadd.f32 %v222, 0.0
        %v224 = vsub.f32 %v185, 40.625
        %v225 = vtanh.pop %v224
        %v226 = vadd.f32 %v225, 0.0
        %v227 = vsub.f32 %v185, 43.75
        %v228 = vtanh.pop %v227
        %v229 = vadd.f32 %v228, 0.0
        %v230 = vsub.f32 %v185, 46.875
        %v231 = vtanh.pop %v230
        %v232 = vadd.f32 %v231, 0.0
        %v233 = vsub.f32 %v185, 50.0
        %v234 = vtanh.pop %v233
        %v235 = vadd.f32 %v234, 0.0
        %v236 = vld [vmem:[#allocation2] sm:$0xff]
        %v237 = vld [vmem:[#allocation2 + $0x8] sm:$0xff]
        %v238 = vld [vmem:[#allocation2 + $0x10] sm:$0x1]
        %v240 = vlaneseq
        %v241 = vshrl.u32 %v240, 7
        %v242 = vsub.s32 0, %v241
        %v243 = vrot.slane %v190, %v242
        %v246 = vlaneseq
        %v247 = vshrl.u32 %v246, 7
        %v248 = vsub.s32 0, %v247
        %v249 = vrot.slane %v193, %v248
        %v252 = vlaneseq
        %v253 = vshrl.u32 %v252, 7
        %v254 = vsub.s32 0, %v253
        %v255 = vrot.slane %v196, %v254
        %v258 = vlaneseq
        %v259 = vshrl.u32 %v258, 7
        %v260 = vsub.s32 0, %v259
        %v261 = vrot.slane %v199, %v260
        %v264 = vlaneseq
        %v265 = vshrl.u32 %v264, 7
        %v266 = vsub.s32 0, %v265
        %v267 = vrot.slane %v202, %v266
        %v270 = vlaneseq
        %v271 = vshrl.u32 %v270, 7
        %v272 = vsub.s32 0, %v271
        %v273 = vrot.slane %v205, %v272
        %v276 = vlaneseq
        %v277 = vshrl.u32 %v276, 7
        %v278 = vsub.s32 0, %v277
        %v279 = vrot.slane %v208, %v278
        %v282 = vlaneseq
        %v283 = vshrl.u32 %v282, 7
        %v284 = vsub.s32 0, %v283
        %v285 = vrot.slane %v214, %v284
        %v288 = vlaneseq
        %v289 = vshrl.u32 %v288, 7
        %v290 = vsub.s32 0, %v289
        %v291 = vrot.slane %v217, %v290
        %v294 = vlaneseq
        %v295 = vshrl.u32 %v294, 7
        %v296 = vsub.s32 0, %v295
        %v297 = vrot.slane %v220, %v296
        %v300 = vlaneseq
        %v301 = vshrl.u32 %v300, 7
        %v302 = vsub.s32 0, %v301
        %v303 = vrot.slane %v223, %v302
        %v306 = vlaneseq
        %v307 = vshrl.u32 %v306, 7
        %v308 = vsub.s32 0, %v307
        %v309 = vrot.slane %v226, %v308
        %v312 = vlaneseq
        %v313 = vshrl.u32 %v312, 7
        %v314 = vsub.s32 0, %v313
        %v315 = vrot.slane %v229, %v314
        %v318 = vlaneseq
        %v319 = vshrl.u32 %v318, 7
        %v320 = vsub.s32 0, %v319
        %v321 = vrot.slane %v232, %v320
        %vm323 = vcmask 1040384
        %v324 = vsel %vm323, %v187, %v243
        %vm325 = vcmask 1041408
        %v326 = vsel %vm325, %v324, %v249
        %vm327 = vcmask 1042432
        %v328 = vsel %vm327, %v326, %v255
        %vm329 = vcmask 1043456
        %v330 = vsel %vm329, %v328, %v261
        %vm331 = vcmask 1044480
        %v332 = vsel %vm331, %v330, %v267
        %vm333 = vcmask 1045504
        %v334 = vsel %vm333, %v332, %v273
        %vm335 = vcmask 1046528
        %v336 = vsel %vm335, %v334, %v279
        %v337 = vsel %vm323, %v211, %v285
        %v338 = vsel %vm325, %v337, %v291
        %v339 = vsel %vm327, %v338, %v297
        %v340 = vsel %vm329, %v339, %v303
        %v341 = vsel %vm331, %v340, %v309
        %v342 = vsel %vm333, %v341, %v315
        %v343 = vsel %vm335, %v342, %v321
        %v344 = vadd.f32 %v236, %v336
        %v345 = vadd.f32 %v237, %v343
        %v346 = vadd.f32 %v238, %v235
        %347 = vst [vmem:[#allocation2] sm:$0xff] %v344
        %348 = vst [vmem:[#allocation2 + $0x8] sm:$0xff] %v345
        %349 = vst [vmem:[#allocation2 + $0x10] sm:$0x1] %v346
        // Predicated region
        $region33: #{tpu_custom_call.1} parent=23 // pred_check
          %p350 = pneg %p177
        $region34: #{tpu_custom_call.1} parent=23 // pred_check_branch
          %352 = sbr.rel (%p350) target = $region36
        $region35: #{tpu_custom_call.1} parent=23 // pred_region
          %v353 = vld [vmem:[#allocation2] sm:$0xff]
          %v354 = vld [vmem:[#allocation2 + $0x8] sm:$0xff]
          %v355 = vld [vmem:[#allocation2 + $0x10] sm:$0x1]
          %v359 = vrot.slane %v353, 1
          %v360 = vrot.slane %v354, 1
          %v361 = vsel %vm335, %v359, %v360
          %v362 = vrot.slane %v355, 1
          %v363 = vsel %vm335, %v360, %v362
          %v366 = vsub.f32 %v353, %v361
          %v367 = vsub.f32 %v354, %v363
          %v368 = vmul.f32 %v366, 0.03125
          %v369 = vmul.f32 %v367, 0.03125
          %370 = vst [vmem:[%s173] sm:$0xff] %v368
          %371 = vst [vmem:[%s173 + $0x8] sm:$0xff] %v369
        $region36: #{tpu_custom_call.1} parent=23 // pred_fallthru
          _
        %s372 = sand.u32 %s92, 1
        %s373 = scalar_lea.sflag [#allocation5], %s372
        %s374 = sand.u32 %s92, 1
        %s375 = smul.addr %s374, 16
        %s376 = scalar_lea.vmem [#allocation6], %s375
        // Predicated region
        $region37: #{tpu_custom_call.1} parent=23 // pred_check
          %p377 = pneg %p102
        $region38: #{tpu_custom_call.1} parent=23 // pred_check_branch
          %379 = sbr.rel (%p377) target = $region40
        $region39: #{tpu_custom_call.1} parent=23 // pred_region
          %s381 = ssub.s32 256, 256
          %382 = vsyncadd %s373, %s381
          %s383 = smul.addr %s25, 2
          %s384 = sadd.s32 %s26, %s383
          %s385 = smul.addr %s24, 4
          %s386 = sadd.s32 %s384, %s385
          %s387 = smul.addr %s386, 128
          %s388 = scalar_lea.hbm %s1, %s387
          %s389 = sshll.u32 %s376, 4
          %s390 = int_to_ptr.vmem [resolvable:$true] %s389
          %395 = dma.vmem_to_hbm [thread:$0]  %s390, 256, %s388, %s373, 128, 128, 8
        $region40: #{tpu_custom_call.1} parent=23 // pred_fallthru
          _
      $region24: #{tpu_custom_call.1} parent=5 // pred_fallthru
        _
      %p396 = scmp.le.s32.totalorder 2, %s13
      // Predicated region
      $region41: #{tpu_custom_call.1} parent=5 // pred_check
        %p397 = pneg %p396
      $region42: #{tpu_custom_call.1} parent=5 // pred_check_branch
        %399 = sbr.rel (%p397) target = $region44
      $region43: #{tpu_custom_call.1} parent=5 // pred_region
        %s400 = ssub.s32 %s13, 2
        // Predicated region
        $region45: #{tpu_custom_call.1} parent=43 // pred_check
          %p401 = pneg %p108
        $region46: #{tpu_custom_call.1} parent=43 // pred_check_branch
          %403 = sbr.rel (%p401) target = $region48
        $region47: #{tpu_custom_call.1} parent=43 // pred_region
          %s404 = sand.u32 %s93, 1
          %s405 = scalar_lea.sflag [#allocation5], %s404
          %s406 = sand.u32 %s93, 1
          %s407 = smul.addr %s406, 16
          %s408 = scalar_lea.vmem [#allocation6], %s407
          %409 = dma.done %s405, 256
        $region48: #{tpu_custom_call.1} parent=43 // pred_fallthru
          _
      $region44: #{tpu_custom_call.1} parent=5 // pred_fallthru
        _
    $region6: #{tpu_custom_call.1} parent=1 // loop_footer
      %s17 = sadd.s32 1, %s13
    $region7: #{tpu_custom_call.1} parent=1 // loop_footer_branch
      %12 = sbr.rel target = $region3
    $region8: #{tpu_custom_call.1} parent=1 // loop_exit
      _
    %410 = vsyncpa [#allocation4], 1
    %s411 = scalar_lea.sflag [#allocation4], 1
    %412 = vsyncpa %s411, 1
    %413 = vsyncpa [#allocation5], 1
    %s414 = scalar_lea.sflag [#allocation5], 1
    %415 = vsyncpa %s414, 1

</llo_original>
